<compile_context>
chip_gen: v6e
topology: v6e:2x2x1
jax: 0.10.0
libtpu: 0.0.40
codegen_flags: <defaults>
</compile_context>

<pallas_src>
import functools

import jax
import jax.numpy as jnp
from jax import lax
from jax.experimental import pallas as pl
from jax.experimental.pallas import tpu as pltpu


def _round_up(v, m):
    return ((v + m - 1) // m) * m


# ----------------------------------------------------------------------------
# Pallas kernel: entire MLPModel.forward for one batch tile.
# ----------------------------------------------------------------------------
def mlp_model_kernel(
    x_ref,                      # (TB, 3M)    f32 (cast to bf16 in-kernel)
    w1_ref, b1_ref,             # (3M, 128)   bf16, (1, 128)   f32
    w2_ref, b2_ref,             # (128, 64)   bf16, (1, 64)    f32
    wh1_ref, bh1_ref,           # (64, 4N)    bf16, (1, 4N)    f32   [wp1 | wd1]
    wh2_ref, bh2_ref,           # (4N, P_OUT) bf16, (1, P_OUT) f32   blockdiag(wp2, wd2), 0-padded
    pd_ref,                     # output: (TB, P_OUT) f32  = [p | d | 0-pad]
    *, pmax_linear, bmax, N,
):
    eps = jnp.float32(1e-6)
    mm_dtype = w1_ref.dtype

    # In-kernel bf16 cast of the input (VPU op, hidden under slack).
    x = x_ref[...].astype(mm_dtype)

    # Backbone: Linear(3M,128) -> ReLU -> Linear(128,64) -> ReLU (f32 MXU accumulation).
    h1 = jnp.dot(x, w1_ref[...], preferred_element_type=jnp.float32) + b1_ref[...]
    h1 = jnp.maximum(h1, 0.0)
    feat = jnp.dot(h1.astype(mm_dtype), w2_ref[...],
                   preferred_element_type=jnp.float32) + b2_ref[...]
    feat = jnp.maximum(feat, 0.0)

    # Fused heads: one (64,4N) matmul + ReLU, one zero-padded block-diagonal (4N,P_OUT) matmul.
    hh = jnp.dot(feat.astype(mm_dtype), wh1_ref[...],
                 preferred_element_type=jnp.float32) + bh1_ref[...]
    hh = jnp.maximum(hh, 0.0)
    pd_raw = jnp.dot(hh.astype(mm_dtype), wh2_ref[...],
                     preferred_element_type=jnp.float32) + bh2_ref[...]   # (TB, P_OUT)

    # relu + eps, then per-head row-wise normalisation. Pad lanes (col >= 2N) are
    # excluded from the sums and scaled to 0.
    pd = jnp.maximum(pd_raw, 0.0) + eps

    col = lax.broadcasted_iota(jnp.int32, pd.shape, 1)
    is_p = col < N                                            # power head lanes
    is_d = jnp.logical_and(col >= N, col < 2 * N)             # spacing head lanes
    zero = jnp.zeros_like(pd)
    p_sum = jnp.sum(jnp.where(is_p, pd, zero), axis=1, keepdims=True)
    d_sum = jnp.sum(jnp.where(is_d, pd, zero), axis=1, keepdims=True)

    inv_p = pl.reciprocal(jnp.maximum(p_sum, eps), approx=True)
    inv_d = pl.reciprocal(jnp.maximum(d_sum, eps), approx=True)

    scale = jnp.where(is_p,
                      jnp.float32(pmax_linear) * inv_p,
                      jnp.where(is_d, jnp.float32(bmax) * inv_d, jnp.float32(0.0)))
    pd_ref[...] = (pd * scale).astype(pd_ref.dtype)


# ----------------------------------------------------------------------------
# Wrapper: flattening + head-weight fusion/padding (done once) + pallas_call.
# ----------------------------------------------------------------------------
def _choose_batch_tile(B, batch_tile):
    """Tile multiple of 8, >= 2 grid steps (even when possible) for v7x megacore."""
    if B <= 8:
        return B                                   # single tiny tile, full-dim block
    tb = min(batch_tile, _round_up(pl.cdiv(B, 2), 8))
    steps = pl.cdiv(B, tb)
    if steps > 1 and steps % 2 == 1:
        tb = min(batch_tile, _round_up(pl.cdiv(B, steps + 1), 8))
    return tb


def mlp_model_forward(users, params, *, N, pmax_linear, delta_min, waveguide_bound,
                      batch_tile=1024):
    B = users.shape[0]
    mm_dtype = jnp.bfloat16
    f32 = jnp.float32

    x = users.reshape(B, -1).astype(f32)             # == users.view(B, -1); stays f32
    three_m = x.shape[1]
    bmax = 2.0 * waveguide_bound - (N - 1) * delta_min

    # --- fuse the two head branches + pad to a lane-dense output width (once) ---
    P_OUT = _round_up(2 * N, 128)
    wh1 = jnp.concatenate([params["wp1"], params["wd1"]], axis=1)      # (64, 4N)
    bh1 = jnp.concatenate([params["bp1"], params["bd1"]], axis=1)      # (1, 4N)
    zblk = jnp.zeros((2 * N, N), f32)
    wh2 = jnp.concatenate(
        [jnp.concatenate([params["wp2"], zblk], axis=1),
         jnp.concatenate([zblk, params["wd2"]], axis=1)], axis=0)      # (4N, 2N) blockdiag
    bh2 = jnp.concatenate([params["bp2"], params["bd2"]], axis=1)      # (1, 2N)
    pad = P_OUT - 2 * N
    if pad:
        wh2 = jnp.pad(wh2, ((0, 0), (0, pad)))                         # (4N, P_OUT)
        bh2 = jnp.pad(bh2, ((0, 0), (0, pad)))                         # (1, P_OUT)

    w1 = params["w1"].astype(mm_dtype)
    w2 = params["w2"].astype(mm_dtype)
    wh1 = wh1.astype(mm_dtype)
    wh2 = wh2.astype(mm_dtype)
    b1 = params["b1"].astype(f32)
    b2 = params["b2"].astype(f32)
    bh1 = bh1.astype(f32)
    bh2 = bh2.astype(f32)

    operands = (x, w1, b1, w2, b2, wh1, bh1, wh2, bh2)

    # --- grid / specs: batch-tiled, weights VMEM-resident across the grid -------
    TB = _choose_batch_tile(B, batch_tile)
    grid = (pl.cdiv(B, TB),)

    def resident(a):
        # Whole array as one block, same block index every grid step.
        # (The spare pipeline buffer for these tiny operands is accepted waste.)
        return pl.BlockSpec(a.shape, lambda i: (0,) * a.ndim)

    in_specs = [pl.BlockSpec((TB, three_m), lambda i: (i, 0))] + \
               [resident(a) for a in operands[1:]]
    out_specs = pl.BlockSpec((TB, P_OUT), lambda i: (i, 0))

    # Advisory cost estimate so XLA schedules the custom call sensibly.
    flops = 2 * B * (three_m * 128 + 128 * 64 + 64 * 4 * N + 4 * N * P_OUT)
    bytes_accessed = (4 * (x.size + B * P_OUT)
                      + 2 * (w1.size + w2.size + wh1.size + wh2.size)
                      + 4 * (b1.size + b2.size + bh1.size + bh2.size))
    cost = pl.CostEstimate(flops=int(flops), transcendentals=int(2 * B),
                           bytes_accessed=int(bytes_accessed))

    kernel = functools.partial(
        mlp_model_kernel, pmax_linear=float(pmax_linear), bmax=float(bmax), N=int(N))

    pd = pl.pallas_call(
        kernel,
        grid=grid,
        in_specs=in_specs,
        out_specs=out_specs,
        out_shape=jax.ShapeDtypeStruct((B, P_OUT), jnp.float32),
        compiler_params=pltpu.CompilerParams(
            dimension_semantics=("parallel",),
            vmem_limit_bytes=32 * 1024 * 1024),     # v5e scoped default is only 16 MiB
        cost_estimate=cost,
    )(*operands)

    return pd[:, :N], pd[:, N:2 * N]


# ----------------------------------------------------------------------------
# Deterministic parameter init (PyTorch-Linear-style uniform(-1/sqrt(in), +)).
# ----------------------------------------------------------------------------
def init_params(key, M, N):
    def linear(key, fan_in, fan_out):
        kw, kb = jax.random.split(key)
        bound = 1.0 / jnp.sqrt(jnp.float32(fan_in))
        w = jax.random.uniform(kw, (fan_in, fan_out), jnp.float32, -bound, bound)
        b = jax.random.uniform(kb, (1, fan_out), jnp.float32, -bound, bound)
        return w, b

    keys = jax.random.split(key, 6)
    w1, b1 = linear(keys[0], 3 * M, 128)
    w2, b2 = linear(keys[1], 128, 64)
    wp1, bp1 = linear(keys[2], 64, 2 * N)
    wp2, bp2 = linear(keys[3], 2 * N, N)
    wd1, bd1 = linear(keys[4], 64, 2 * N)
    wd2, bd2 = linear(keys[5], 2 * N, N)
    return dict(w1=w1, b1=b1, w2=w2, b2=b2,
                wp1=wp1, bp1=bp1, wp2=wp2, bp2=bp2,
                wd1=wd1, bd1=bd1, wd2=wd2, bd2=bd2)


# ----------------------------------------------------------------------------
# References.
# ----------------------------------------------------------------------------
def _normalize(p_raw, d_raw, *, N, pmax_linear, delta_min, waveguide_bound):
    eps = 1e-6
    p = jnp.maximum(p_raw, 0.0) + eps
    p = pmax_linear * p / jnp.maximum(p.sum(axis=1, keepdims=True), eps)
    bmax = 2.0 * waveguide_bound - (N - 1) * delta_min
    d = jnp.maximum(d_raw, 0.0) + eps
    d = bmax * d / jnp.maximum(d.sum(axis=1, keepdims=True), eps)
    return p, d


def reference_forward_f32(users, params, **kw):
    """Pure f32 mirror of the PyTorch forward."""
    B = users.shape[0]
    x = users.reshape(B, -1).astype(jnp.float32)
    h1 = jnp.maximum(x @ params["w1"] + params["b1"], 0.0)
    feat = jnp.maximum(h1 @ params["w2"] + params["b2"], 0.0)
    p_raw = jnp.maximum(feat @ params["wp1"] + params["bp1"], 0.0) @ params["wp2"] + params["bp2"]
    d_raw = jnp.maximum(feat @ params["wd1"] + params["bd1"], 0.0) @ params["wd2"] + params["bd2"]
    return _normalize(p_raw, d_raw, **kw)


def reference_forward_bf16_mirror(users, params, **kw):
    """Same math but rounding operands to bf16 at the same points as the kernel."""
    bf = lambda a: a.astype(jnp.bfloat16).astype(jnp.float32)
    B = users.shape[0]
    x = bf(users.reshape(B, -1).astype(jnp.float32))
    h1 = jnp.maximum(x @ bf(params["w1"]) + params["b1"], 0.0)
    feat = jnp.maximum(bf(h1) @ bf(params["w2"]) + params["b2"], 0.0)
    hp = jnp.maximum(bf(feat) @ bf(params["wp1"]) + params["bp1"], 0.0)
    hd = jnp.maximum(bf(feat) @ bf(params["wd1"]) + params["bd1"], 0.0)
    p_raw = bf(hp) @ bf(params["wp2"]) + params["bp2"]
    d_raw = bf(hd) @ bf(params["wd2"]) + params["bd2"]
    return _normalize(p_raw, d_raw, **kw)


if __name__ == "__main__":
    # Small, module-consistent sizes.
    B, M, N = 8, 4, 8
    Pmax_linear = 1.0
    delta_min = 0.1
    H = 10.0                   # unused in forward (only in delta_to_position)
    waveguide_bound = 2.0
    # TODO(synk): delta_to_position (sequential cumulative antenna placement) is not
    # part of forward() and is left unimplemented in the kernel.

    key = jax.random.PRNGKey(0)
    k_users, k_params = jax.random.split(key)
    users = jax.random.normal(k_users, (B, M, 3), jnp.float32)
    params = init_params(k_params, M, N)

    cfg = dict(N=N, pmax_linear=Pmax_linear, delta_min=delta_min,
               waveguide_bound=waveguide_bound)

    p, d = mlp_model_forward(users, params, **cfg)
    jax.block_until_ready((p, d))
    assert p.shape == (B, N) and d.shape == (B, N)

    # Tight check against a reference that mirrors the kernel's bf16 rounding points
    # (only differences: MXU accumulation order + approx reciprocal).
    p_m, d_m = reference_forward_bf16_mirror(users, params, **cfg)
    assert jnp.allclose(p, p_m, rtol=2e-3, atol=2e-3)
    assert jnp.allclose(d, d_m, rtol=2e-3, atol=2e-3)

    # Looser sanity check against the exact f32 PyTorch-semantics reference
    # (slack covers bf16 weight/activation quantisation).
    p_f, d_f = reference_forward_f32(users, params, **cfg)
    assert jnp.allclose(p, p_f, rtol=1e-2, atol=5e-3)
    assert jnp.allclose(d, d_f, rtol=1e-2, atol=5e-3)

    print("KERNEL_OK")
</pallas_src>

<mosaic_0001>
module attributes {stable_mosaic.version = 11 : i64} {
  func.func @mlp_model_kernel(%arg0: i32, %arg1: memref<8x12xf32, #tpu.memory_space<vmem>>, %arg2: memref<12x128xbf16, #tpu.memory_space<vmem>>, %arg3: memref<1x128xf32, #tpu.memory_space<vmem>>, %arg4: memref<128x64xbf16, #tpu.memory_space<vmem>>, %arg5: memref<1x64xf32, #tpu.memory_space<vmem>>, %arg6: memref<64x32xbf16, #tpu.memory_space<vmem>>, %arg7: memref<1x32xf32, #tpu.memory_space<vmem>>, %arg8: memref<32x128xbf16, #tpu.memory_space<vmem>>, %arg9: memref<1x128xf32, #tpu.memory_space<vmem>>, %arg10: memref<8x128xf32, #tpu.memory_space<vmem>>) attributes {dimension_semantics = [#tpu.dimension_semantics<parallel>], iteration_bounds = array<i64: 1>, scalar_prefetch = 0 : i64, scratch_operands = 0 : i64, tpu.core_type = #tpu.core_type<tc>, window_params = [{transform_indices = @transform_0, window_bounds = array<i64: 8, 12>}, {pipeline_mode = #tpu.pipeline_mode<synchronous>, transform_indices = @transform_1, window_bounds = array<i64: 12, 128>}, {pipeline_mode = #tpu.pipeline_mode<synchronous>, transform_indices = @transform_2, window_bounds = array<i64: 1, 128>}, {pipeline_mode = #tpu.pipeline_mode<synchronous>, transform_indices = @transform_3, window_bounds = array<i64: 128, 64>}, {pipeline_mode = #tpu.pipeline_mode<synchronous>, transform_indices = @transform_4, window_bounds = array<i64: 1, 64>}, {pipeline_mode = #tpu.pipeline_mode<synchronous>, transform_indices = @transform_5, window_bounds = array<i64: 64, 32>}, {pipeline_mode = #tpu.pipeline_mode<synchronous>, transform_indices = @transform_6, window_bounds = array<i64: 1, 32>}, {pipeline_mode = #tpu.pipeline_mode<synchronous>, transform_indices = @transform_7, window_bounds = array<i64: 32, 128>}, {pipeline_mode = #tpu.pipeline_mode<synchronous>, transform_indices = @transform_8, window_bounds = array<i64: 1, 128>}, {transform_indices = @transform_9, window_bounds = array<i64: 8, 128>}]} {
    %c0 = arith.constant 0 : index
    %c0_0 = arith.constant 0 : index
    %0 = vector.load %arg1[%c0, %c0_0] : memref<8x12xf32, #tpu.memory_space<vmem>>, vector<8x12xf32>
    %1 = arith.truncf %0 : vector<8x12xf32> to vector<8x12xbf16>
    %c0_1 = arith.constant 0 : index
    %c0_2 = arith.constant 0 : index
    %2 = vector.load %arg2[%c0_1, %c0_2] : memref<12x128xbf16, #tpu.memory_space<vmem>>, vector<12x128xbf16>
    %cst = arith.constant dense<0.000000e+00> : vector<8x128xf32>
    %3 = tpu.matmul %1, %2, %cst {dimension_numbers = #tpu.dot_dimension_numbers<[1], [0], [0], [1], [0, 0, 1, 1], [], []>} : vector<8x12xbf16>, vector<12x128xbf16>, vector<8x128xf32> -> vector<8x128xf32>
    %c0_3 = arith.constant 0 : index
    %c0_4 = arith.constant 0 : index
    %4 = vector.load %arg3[%c0_3, %c0_4] : memref<1x128xf32, #tpu.memory_space<vmem>>, vector<1x128xf32>
    %5 = vector.broadcast %4 : vector<1x128xf32> to vector<8x128xf32>
    %6 = arith.addf %3, %5 : vector<8x128xf32>
    %cst_5 = arith.constant 0.000000e+00 : f32
    %7 = vector.broadcast %cst_5 : f32 to vector<8x128xf32>
    %8 = arith.maximumf %6, %7 : vector<8x128xf32>
    %9 = arith.truncf %8 : vector<8x128xf32> to vector<8x128xbf16>
    %c0_6 = arith.constant 0 : index
    %c0_7 = arith.constant 0 : index
    %10 = vector.load %arg4[%c0_6, %c0_7] : memref<128x64xbf16, #tpu.memory_space<vmem>>, vector<128x64xbf16>
    %cst_8 = arith.constant dense<0.000000e+00> : vector<8x64xf32>
    %11 = tpu.matmul %9, %10, %cst_8 {dimension_numbers = #tpu.dot_dimension_numbers<[1], [0], [0], [1], [0, 0, 1, 1], [], []>} : vector<8x128xbf16>, vector<128x64xbf16>, vector<8x64xf32> -> vector<8x64xf32>
    %c0_9 = arith.constant 0 : index
    %c0_10 = arith.constant 0 : index
    %12 = vector.load %arg5[%c0_9, %c0_10] : memref<1x64xf32, #tpu.memory_space<vmem>>, vector<1x64xf32>
    %13 = vector.broadcast %12 : vector<1x64xf32> to vector<8x64xf32>
    %14 = arith.addf %11, %13 : vector<8x64xf32>
    %cst_11 = arith.constant 0.000000e+00 : f32
    %15 = vector.broadcast %cst_11 : f32 to vector<8x64xf32>
    %16 = arith.maximumf %14, %15 : vector<8x64xf32>
    %17 = arith.truncf %16 : vector<8x64xf32> to vector<8x64xbf16>
    %c0_12 = arith.constant 0 : index
    %c0_13 = arith.constant 0 : index
    %18 = vector.load %arg6[%c0_12, %c0_13] : memref<64x32xbf16, #tpu.memory_space<vmem>>, vector<64x32xbf16>
    %cst_14 = arith.constant dense<0.000000e+00> : vector<8x32xf32>
    %19 = tpu.matmul %17, %18, %cst_14 {dimension_numbers = #tpu.dot_dimension_numbers<[1], [0], [0], [1], [0, 0, 1, 1], [], []>} : vector<8x64xbf16>, vector<64x32xbf16>, vector<8x32xf32> -> vector<8x32xf32>
    %c0_15 = arith.constant 0 : index
    %c0_16 = arith.constant 0 : index
    %20 = vector.load %arg7[%c0_15, %c0_16] : memref<1x32xf32, #tpu.memory_space<vmem>>, vector<1x32xf32>
    %21 = vector.broadcast %20 : vector<1x32xf32> to vector<8x32xf32>
    %22 = arith.addf %19, %21 : vector<8x32xf32>
    %cst_17 = arith.constant 0.000000e+00 : f32
    %23 = vector.broadcast %cst_17 : f32 to vector<8x32xf32>
    %24 = arith.maximumf %22, %23 : vector<8x32xf32>
    %25 = arith.truncf %24 : vector<8x32xf32> to vector<8x32xbf16>
    %c0_18 = arith.constant 0 : index
    %c0_19 = arith.constant 0 : index
    %26 = vector.load %arg8[%c0_18, %c0_19] : memref<32x128xbf16, #tpu.memory_space<vmem>>, vector<32x128xbf16>
    %cst_20 = arith.constant dense<0.000000e+00> : vector<8x128xf32>
    %27 = tpu.matmul %25, %26, %cst_20 {dimension_numbers = #tpu.dot_dimension_numbers<[1], [0], [0], [1], [0, 0, 1, 1], [], []>} : vector<8x32xbf16>, vector<32x128xbf16>, vector<8x128xf32> -> vector<8x128xf32>
    %c0_21 = arith.constant 0 : index
    %c0_22 = arith.constant 0 : index
    %28 = vector.load %arg9[%c0_21, %c0_22] : memref<1x128xf32, #tpu.memory_space<vmem>>, vector<1x128xf32>
    %29 = vector.broadcast %28 : vector<1x128xf32> to vector<8x128xf32>
    %30 = arith.addf %27, %29 : vector<8x128xf32>
    %cst_23 = arith.constant 0.000000e+00 : f32
    %31 = vector.broadcast %cst_23 : f32 to vector<8x128xf32>
    %32 = arith.maximumf %30, %31 : vector<8x128xf32>
    %cst_24 = arith.constant 9.99999997E-7 : f32
    %33 = vector.broadcast %cst_24 : f32 to vector<8x128xf32>
    %34 = arith.addf %32, %33 : vector<8x128xf32>
    %35 = tpu.iota {dimensions = array<i32: 1>} : vector<8x128xi32>
    %c8_i32 = arith.constant 8 : i32
    %36 = vector.broadcast %c8_i32 : i32 to vector<8x128xi32>
    %37 = arith.cmpi slt, %35, %36 : vector<8x128xi32>
    %c8_i32_25 = arith.constant 8 : i32
    %38 = vector.broadcast %c8_i32_25 : i32 to vector<8x128xi32>
    %39 = arith.cmpi sge, %35, %38 : vector<8x128xi32>
    %c16_i32 = arith.constant 16 : i32
    %40 = vector.broadcast %c16_i32 : i32 to vector<8x128xi32>
    %41 = arith.cmpi slt, %35, %40 : vector<8x128xi32>
    %42 = arith.andi %39, %41 : vector<8x128xi1>
    %cst_26 = arith.constant 0.000000e+00 : f32
    %43 = vector.broadcast %cst_26 : f32 to vector<8x128xf32>
    %44 = arith.select %37, %34, %43 : vector<8x128xi1>, vector<8x128xf32>
    %cst_27 = arith.constant dense<0.000000e+00> : vector<8xf32>
    %45 = vector.multi_reduction <add>, %44, %cst_27 [1] : vector<8x128xf32> to vector<8xf32>
    %46 = vector.shape_cast %45 : vector<8xf32> to vector<8x1xf32>
    %47 = arith.select %42, %34, %43 : vector<8x128xi1>, vector<8x128xf32>
    %cst_28 = arith.constant dense<0.000000e+00> : vector<8xf32>
    %48 = vector.multi_reduction <add>, %47, %cst_28 [1] : vector<8x128xf32> to vector<8xf32>
    %49 = vector.shape_cast %48 : vector<8xf32> to vector<8x1xf32>
    %cst_29 = arith.constant 9.99999997E-7 : f32
    %50 = vector.broadcast %cst_29 : f32 to vector<8x1xf32>
    %51 = arith.maximumf %46, %50 : vector<8x1xf32>
    %52 = tpu.reciprocal %51 {approx = true} : vector<8x1xf32> -> vector<8x1xf32>
    %cst_30 = arith.constant 9.99999997E-7 : f32
    %53 = vector.broadcast %cst_30 : f32 to vector<8x1xf32>
    %54 = arith.maximumf %49, %53 : vector<8x1xf32>
    %55 = tpu.reciprocal %54 {approx = true} : vector<8x1xf32> -> vector<8x1xf32>
    %cst_31 = arith.constant 1.000000e+00 : f32
    %56 = vector.broadcast %cst_31 : f32 to vector<8x1xf32>
    %57 = arith.mulf %56, %52 : vector<8x1xf32>
    %cst_32 = arith.constant 3.300000e+00 : f32
    %58 = vector.broadcast %cst_32 : f32 to vector<8x1xf32>
    %59 = arith.mulf %58, %55 : vector<8x1xf32>
    %cst_33 = arith.constant 0.000000e+00 : f32
    %60 = vector.shape_cast %59 : vector<8x1xf32> to vector<8x1xf32>
    %61 = vector.broadcast %60 : vector<8x1xf32> to vector<8x128xf32>
    %62 = vector.broadcast %cst_33 : f32 to vector<8x128xf32>
    %63 = arith.select %42, %61, %62 : vector<8x128xi1>, vector<8x128xf32>
    %64 = vector.shape_cast %57 : vector<8x1xf32> to vector<8x1xf32>
    %65 = vector.broadcast %64 : vector<8x1xf32> to vector<8x128xf32>
    %66 = arith.select %37, %65, %63 : vector<8x128xi1>, vector<8x128xf32>
    %67 = arith.mulf %34, %66 : vector<8x128xf32>
    %c0_34 = arith.constant 0 : index
    %c0_35 = arith.constant 0 : index
    %68 = vector.load %arg10[%c0_34, %c0_35] : memref<8x128xf32, #tpu.memory_space<vmem>>, vector<8x128xf32>
    tpu.vector_store %arg10[%c0_34, %c0_35], %67 {strides = array<i32>} : memref<8x128xf32, #tpu.memory_space<vmem>>, vector<8x128xf32>,
    return
  }
  func.func @transform_0(%arg0: i32) -> (i32, i32) {
    %c0_i32 = arith.constant 0 : i32
    %c0_i32_0 = arith.constant 0 : i32
    return %arg0, %c0_i32 : i32, i32
  }
  func.func @transform_1(%arg0: i32) -> (i32, i32) {
    %c0_i32 = arith.constant 0 : i32
    %c0_i32_0 = arith.constant 0 : i32
    %c0_i32_1 = arith.constant 0 : i32
    return %c0_i32, %c0_i32_0 : i32, i32
  }
  func.func @transform_2(%arg0: i32) -> (i32, i32) {
    %c0_i32 = arith.constant 0 : i32
    %c0_i32_0 = arith.constant 0 : i32
    %c0_i32_1 = arith.constant 0 : i32
    return %c0_i32, %c0_i32_0 : i32, i32
  }
  func.func @transform_3(%arg0: i32) -> (i32, i32) {
    %c0_i32 = arith.constant 0 : i32
    %c0_i32_0 = arith.constant 0 : i32
    %c0_i32_1 = arith.constant 0 : i32
    return %c0_i32, %c0_i32_0 : i32, i32
  }
  func.func @transform_4(%arg0: i32) -> (i32, i32) {
    %c0_i32 = arith.constant 0 : i32
    %c0_i32_0 = arith.constant 0 : i32
    %c0_i32_1 = arith.constant 0 : i32
    return %c0_i32, %c0_i32_0 : i32, i32
  }
  func.func @transform_5(%arg0: i32) -> (i32, i32) {
    %c0_i32 = arith.constant 0 : i32
    %c0_i32_0 = arith.constant 0 : i32
    %c0_i32_1 = arith.constant 0 : i32
    return %c0_i32, %c0_i32_0 : i32, i32
  }
  func.func @transform_6(%arg0: i32) -> (i32, i32) {
    %c0_i32 = arith.constant 0 : i32
    %c0_i32_0 = arith.constant 0 : i32
    %c0_i32_1 = arith.constant 0 : i32
    return %c0_i32, %c0_i32_0 : i32, i32
  }
  func.func @transform_7(%arg0: i32) -> (i32, i32) {
    %c0_i32 = arith.constant 0 : i32
    %c0_i32_0 = arith.constant 0 : i32
    %c0_i32_1 = arith.constant 0 : i32
    return %c0_i32, %c0_i32_0 : i32, i32
  }
  func.func @transform_8(%arg0: i32) -> (i32, i32) {
    %c0_i32 = arith.constant 0 : i32
    %c0_i32_0 = arith.constant 0 : i32
    %c0_i32_1 = arith.constant 0 : i32
    return %c0_i32, %c0_i32_0 : i32, i32
  }
  func.func @transform_9(%arg0: i32) -> (i32, i32) {
    %c0_i32 = arith.constant 0 : i32
    %c0_i32_0 = arith.constant 0 : i32
    return %arg0, %c0_i32 : i32, i32
  }
}

</mosaic_0001>

<llo_original>
// kernel: tpu_custom_call.1
$region0: #{tpu_custom_call.1}
  #allocation0 [shape = 'u32[]', space=smem, size = 0x4, offset = 0x4, fixed_abs, tag = 'smem constant byte address 0x4 - core index']
  #allocation1 [shape = 'u32[144,128]{1,0:T(1,128)}', space=vmem, size = 0x12000, scoped, tag = 'internal scratch']
  %s0 = inlined_call_operand.vmem [shape: f32[8,12], index: 0, kind: input, shape index: {}]
  %s1 = inlined_call_operand.vmem [shape: bf16[12,128], index: 1, kind: input, shape index: {}]
  %s2 = inlined_call_operand.vmem [shape: f32[1,128], index: 2, kind: input, shape index: {}]
  %s3 = inlined_call_operand.vmem [shape: bf16[128,64], index: 3, kind: input, shape index: {}]
  %s4 = inlined_call_operand.vmem [shape: f32[1,64], index: 4, kind: input, shape index: {}]
  %s5 = inlined_call_operand.vmem [shape: bf16[64,32], index: 5, kind: input, shape index: {}]
  %s6 = inlined_call_operand.vmem [shape: f32[1,32], index: 6, kind: input, shape index: {}]
  %s7 = inlined_call_operand.vmem [shape: bf16[32,128], index: 7, kind: input, shape index: {}]
  %s8 = inlined_call_operand.vmem [shape: f32[1,128], index: 8, kind: input, shape index: {}]
  %s9 = inlined_call_operand.hbm [shape: f32[8,128], index: 9, kind: output, shape index: {}]
  %s10 = sld [smem:[#allocation0]]
  $region46: #{tpu_custom_call.1} parent=0
    _
  %s12 = ssub.s32 1, %s10
  %s13 = scalar_select 0, %s12, %s10
  $region1: #{tpu_custom_call.1} parent=0
    #allocation2 [shape = 'u8[4096]{0}', space=vmem, size = 0x1000, scoped, tag = 'output window, operand 0, single buffered']
    #allocation3 [shape = 's32[1]{0}', space=sflag, size = 0x4, scoped, tag = 'scoped memory for tpu_custom_call.1']
    %14 = vsyncpa [#allocation3], 0
    // Predicated region
    $region2: #{tpu_custom_call.1} parent=1 // pred_check
      _
    $region3: #{tpu_custom_call.1} parent=1 // pred_check_branch
      %16 = sbr.rel (0) target = $region5
    $region4: #{tpu_custom_call.1} parent=1 // pred_region
      _
    $region5: #{tpu_custom_call.1} parent=1 // pred_fallthru
      _
    // Predicated region
    $region6: #{tpu_custom_call.1} parent=1 // pred_check
      _
    $region7: #{tpu_custom_call.1} parent=1 // pred_check_branch
      %18 = sbr.rel (0) target = $region9
    $region8: #{tpu_custom_call.1} parent=1 // pred_region
      _
    $region9: #{tpu_custom_call.1} parent=1 // pred_fallthru
      _
    // Predicated region
    $region10: #{tpu_custom_call.1} parent=1 // pred_check
      _
    $region11: #{tpu_custom_call.1} parent=1 // pred_check_branch
      %20 = sbr.rel (0) target = $region13
    $region12: #{tpu_custom_call.1} parent=1 // pred_region
      _
    $region13: #{tpu_custom_call.1} parent=1 // pred_fallthru
      _
    // Predicated region
    $region14: #{tpu_custom_call.1} parent=1 // pred_check
      _
    $region15: #{tpu_custom_call.1} parent=1 // pred_check_branch
      %22 = sbr.rel (0) target = $region17
    $region16: #{tpu_custom_call.1} parent=1 // pred_region
      _
    $region17: #{tpu_custom_call.1} parent=1 // pred_fallthru
      _
    // Predicated region
    $region18: #{tpu_custom_call.1} parent=1 // pred_check
      _
    $region19: #{tpu_custom_call.1} parent=1 // pred_check_branch
      %24 = sbr.rel (0) target = $region21
    $region20: #{tpu_custom_call.1} parent=1 // pred_region
      _
    $region21: #{tpu_custom_call.1} parent=1 // pred_fallthru
      _
    // Predicated region
    $region22: #{tpu_custom_call.1} parent=1 // pred_check
      _
    $region23: #{tpu_custom_call.1} parent=1 // pred_check_branch
      %26 = sbr.rel (0) target = $region25
    $region24: #{tpu_custom_call.1} parent=1 // pred_region
      _
    $region25: #{tpu_custom_call.1} parent=1 // pred_fallthru
      _
    // Predicated region
    $region26: #{tpu_custom_call.1} parent=1 // pred_check
      _
    $region27: #{tpu_custom_call.1} parent=1 // pred_check_branch
      %28 = sbr.rel (0) target = $region29
    $region28: #{tpu_custom_call.1} parent=1 // pred_region
      _
    $region29: #{tpu_custom_call.1} parent=1 // pred_fallthru
      _
    // Predicated region
    $region30: #{tpu_custom_call.1} parent=1 // pred_check
      _
    $region31: #{tpu_custom_call.1} parent=1 // pred_check_branch
      %30 = sbr.rel (0) target = $region33
    $region32: #{tpu_custom_call.1} parent=1 // pred_region
      _
    $region33: #{tpu_custom_call.1} parent=1 // pred_fallthru
      _
    // Predicated region
    $region34: #{tpu_custom_call.1} parent=1 // pred_check
      _
    $region35: #{tpu_custom_call.1} parent=1 // pred_check_branch
      %32 = sbr.rel (0) target = $region37
    $region36: #{tpu_custom_call.1} parent=1 // pred_region
      _
    $region37: #{tpu_custom_call.1} parent=1 // pred_fallthru
      _
    %v34 = vld [vmem:[%s0] sm:$0xff]
    %v35 = vpack.c.bf16 %v34, %v34
    %v36 = vld [vmem:[%s1] sm:$0xf]
    %v37 = vld [vmem:[%s1 + $0x4] sm:$0x3]
    %v38 = vld [vmem:[%s2] sm:$0x1]
    %v40 = vlaneseq
    %v41 = vshrl.u32 %v40, 7
    %v42 = vsub.s32 0, %v41
    %v43 = vrot.slane %v38, %v42
    %v47 = vunpack.c.l.b16 %v36
    %v48 = vunpack.c.l.b16 %v37
    %v49 = vpack.c.b16 %v48, %v47
    %vm50 = vcmask 97280
    %v52 = vsel %vm50, %v35, 0
    %vm54 = vcmask 1045504
    %v56 = vsel %vm54, %v49, 0
    %58 = vmatprep.subr.bf16.mxu0 0
    %59 = vmatpush1.bf16.msra.mxu0 0
    %60 = vmatprep.subr.bf16.mxu0 0
    %61 = vmatpush1.bf16.msra.mxu0 0
    %62 = vmatprep.subr.bf16.mxu0 0
    %63 = vmatpush1.bf16.msra.mxu0 0
    %64 = vmatprep.subr.bf16.mxu0 0
    %65 = vmatpush1.bf16.msra.mxu0 0
    %66 = vmatprep.subr.bf16.mxu0 0
    %67 = vmatpush1.bf16.msra.mxu0 0
    %68 = vmatprep.subr.bf16.mxu0 0
    %69 = vmatpush1.bf16.msra.mxu0 0
    %70 = vmatprep.subr.bf16.mxu0 0
    %71 = vmatpush1.bf16.msra.mxu0 0
    %72 = vmatprep.subr.bf16.mxu0 0
    %73 = vmatpush1.bf16.msra.mxu0 %v56
    %74 = vmatprep.subr.bf16.mxu0 0
    %75 = vmatpush2.bf16.msra.mxu0 0
    %76 = vmatprep.subr.bf16.mxu0 0
    %77 = vmatpush2.bf16.msra.mxu0 0
    %78 = vmatprep.subr.bf16.mxu0 0
    %79 = vmatpush2.bf16.msra.mxu0 0
    %80 = vmatprep.subr.bf16.mxu0 0
    %81 = vmatpush2.bf16.msra.mxu0 0
    %82 = vmatprep.subr.bf16.mxu0 0
    %83 = vmatpush2.bf16.msra.mxu0 0
    %84 = vmatprep.subr.bf16.mxu0 0
    %85 = vmatpush2.bf16.msra.mxu0 0
    %86 = vmatprep.subr.bf16.mxu0 0
    %87 = vmatpush2.bf16.msra.mxu0 0
    %88 = vmatprep.subr.bf16.mxu0 0
    %89 = vmatpush2.bf16.msra.mxu0 0
    %90 = vmatprep.mubr.bf16.mxu0 0
    %91 = vmatmul.mubr.bf16.gmra.mxu0 %v52
    %v92 = vpop.f32.mrf.mxu0
    %v93 = vadd.f32 %v43, %v92
    %v94 = vpop.f32.mrf.mxu0
    %v95 = vpop.f32.mrf.mxu0
    %v96 = vpop.f32.mrf.mxu0
    %97 = vdwg.mxu0
    %v98 = vmax.f32 %v93, 0.0
    %v99 = vpack.c.bf16 %v98, %v98
    %v100 = vld [vmem:[%s3] sm:$0xf]
    %v101 = vld [vmem:[%s3 + $0x4] sm:$0xf]
    %v102 = vld [vmem:[%s3 + $0x8] sm:$0xf]
    %v103 = vld [vmem:[%s3 + $0xc] sm:$0xf]
    %v104 = vld [vmem:[%s3 + $0x10] sm:$0xf]
    %v105 = vld [vmem:[%s3 + $0x14] sm:$0xf]
    %v106 = vld [vmem:[%s3 + $0x18] sm:$0xf]
    %v107 = vld [vmem:[%s3 + $0x1c] sm:$0xf]
    %v108 = vld [vmem:[%s3 + $0x20] sm:$0xf]
    %v109 = vld [vmem:[%s3 + $0x24] sm:$0xf]
    %v110 = vld [vmem:[%s3 + $0x28] sm:$0xf]
    %v111 = vld [vmem:[%s3 + $0x2c] sm:$0xf]
    %v112 = vld [vmem:[%s3 + $0x30] sm:$0xf]
    %v113 = vld [vmem:[%s3 + $0x34] sm:$0xf]
    %v114 = vld [vmem:[%s3 + $0x38] sm:$0xf]
    %v115 = vld [vmem:[%s3 + $0x3c] sm:$0xf]
    %v116 = vld [vmem:[%s4] sm:$0x1]
    %v118 = vlaneseq
    %v119 = vshrl.u32 %v118, 7
    %v120 = vsub.s32 0, %v119
    %v121 = vrot.slane %v116, %v120
    %v139 = vunpack.c.l.b16 %v100
    %v140 = vunpack.c.l.b16 %v101
    %v141 = vunpack.c.l.b16 %v102
    %v142 = vunpack.c.l.b16 %v103
    %v143 = vunpack.c.l.b16 %v104
    %v144 = vunpack.c.l.b16 %v105
    %v145 = vunpack.c.l.b16 %v106
    %v146 = vunpack.c.l.b16 %v107
    %v147 = vunpack.c.l.b16 %v108
    %v148 = vunpack.c.l.b16 %v109
    %v149 = vunpack.c.l.b16 %v110
    %v150 = vunpack.c.l.b16 %v111
    %v151 = vunpack.c.l.b16 %v112
    %v152 = vunpack.c.l.b16 %v113
    %v153 = vunpack.c.l.b16 %v114
    %v154 = vunpack.c.l.b16 %v115
    %v155 = vpack.c.b16 %v140, %v139
    %v156 = vpack.c.b16 %v142, %v141
    %v157 = vpack.c.b16 %v144, %v143
    %v158 = vpack.c.b16 %v146, %v145
    %v159 = vpack.c.b16 %v148, %v147
    %v160 = vpack.c.b16 %v150, %v149
    %v161 = vpack.c.b16 %v152, %v151
    %v162 = vpack.c.b16 %v154, %v153
    %171 = vmatprep.subr.bf16.mxu0 0
    %172 = vmatpush1.bf16.msra.mxu0 %v162
    %173 = vmatprep.subr.bf16.mxu0 0
    %174 = vmatpush1.bf16.msra.mxu0 %v161
    %175 = vmatprep.subr.bf16.mxu0 0
    %176 = vmatpush1.bf16.msra.mxu0 %v160
    %177 = vmatprep.subr.bf16.mxu0 0
    %178 = vmatpush1.bf16.msra.mxu0 %v159
    %179 = vmatprep.subr.bf16.mxu0 0
    %180 = vmatpush1.bf16.msra.mxu0 %v158
    %181 = vmatprep.subr.bf16.mxu0 0
    %182 = vmatpush1.bf16.msra.mxu0 %v157
    %183 = vmatprep.subr.bf16.mxu0 0
    %184 = vmatpush1.bf16.msra.mxu0 %v156
    %185 = vmatprep.subr.bf16.mxu0 0
    %186 = vmatpush1.bf16.msra.mxu0 %v155
    %187 = vmatprep.subr.bf16.mxu0 0
    %188 = vmatpush2.bf16.msra.mxu0 0
    %189 = vmatprep.subr.bf16.mxu0 0
    %190 = vmatpush2.bf16.msra.mxu0 0
    %191 = vmatprep.subr.bf16.mxu0 0
    %192 = vmatpush2.bf16.msra.mxu0 0
    %193 = vmatprep.subr.bf16.mxu0 0
    %194 = vmatpush2.bf16.msra.mxu0 0
    %195 = vmatprep.subr.bf16.mxu0 0
    %196 = vmatpush2.bf16.msra.mxu0 0
    %197 = vmatprep.subr.bf16.mxu0 0
    %198 = vmatpush2.bf16.msra.mxu0 0
    %199 = vmatprep.subr.bf16.mxu0 0
    %200 = vmatpush2.bf16.msra.mxu0 0
    %201 = vmatprep.subr.bf16.mxu0 0
    %202 = vmatpush2.bf16.msra.mxu0 0
    %203 = vmatprep.mubr.bf16.mxu0 0
    %204 = vmatmul.mubr.bf16.gmra.mxu0 %v99
    %v205 = vpop.f32.mrf.mxu0
    %v206 = vadd.f32 %v121, %v205
    %v207 = vpop.f32.mrf.mxu0
    %v208 = vpop.f32.mrf.mxu0
    %v209 = vpop.f32.mrf.mxu0
    %210 = vdwg.mxu0
    %v211 = vmax.f32 %v206, 0.0
    %v212 = vpack.c.bf16 %v211, %v211
    %v213 = vld [vmem:[%s5] sm:$0xf]
    %v214 = vld [vmem:[%s5 + $0x4] sm:$0xf]
    %v215 = vld [vmem:[%s5 + $0x8] sm:$0xf]
    %v216 = vld [vmem:[%s5 + $0xc] sm:$0xf]
    %v217 = vld [vmem:[%s5 + $0x10] sm:$0xf]
    %v218 = vld [vmem:[%s5 + $0x14] sm:$0xf]
    %v219 = vld [vmem:[%s5 + $0x18] sm:$0xf]
    %v220 = vld [vmem:[%s5 + $0x1c] sm:$0xf]
    %v221 = vld [vmem:[%s6] sm:$0x1]
    %v223 = vlaneseq
    %v224 = vshrl.u32 %v223, 7
    %v225 = vsub.s32 0, %v224
    %v226 = vrot.slane %v221, %v225
    %v236 = vunpack.c.l.b16 %v213
    %v237 = vunpack.c.l.b16 %v214
    %v238 = vunpack.c.l.b16 %v215
    %v239 = vunpack.c.l.b16 %v216
    %v240 = vunpack.c.l.b16 %v217
    %v241 = vunpack.c.l.b16 %v218
    %v242 = vunpack.c.l.b16 %v219
    %v243 = vunpack.c.l.b16 %v220
    %v244 = vpack.c.b16 %v237, %v236
    %v245 = vpack.c.b16 %v239, %v238
    %v246 = vpack.c.b16 %v241, %v240
    %v247 = vpack.c.b16 %v243, %v242
    %vm252 = vcmask 523264
    %v254 = vsel %vm252, %v212, 0
    %256 = vmatprep.subr.bf16.mxu0 0
    %257 = vmatpush1.bf16.msra.mxu0 0
    %258 = vmatprep.subr.bf16.mxu0 0
    %259 = vmatpush1.bf16.msra.mxu0 0
    %260 = vmatprep.subr.bf16.mxu0 0
    %261 = vmatpush1.bf16.msra.mxu0 0
    %262 = vmatprep.subr.bf16.mxu0 0
    %263 = vmatpush1.bf16.msra.mxu0 0
    %264 = vmatprep.subr.bf16.mxu0 0
    %265 = vmatpush1.bf16.msra.mxu0 %v247
    %266 = vmatprep.subr.bf16.mxu0 0
    %267 = vmatpush1.bf16.msra.mxu0 %v246
    %268 = vmatprep.subr.bf16.mxu0 0
    %269 = vmatpush1.bf16.msra.mxu0 %v245
    %270 = vmatprep.subr.bf16.mxu0 0
    %271 = vmatpush1.bf16.msra.mxu0 %v244
    %272 = vmatprep.subr.bf16.mxu0 0
    %273 = vmatpush2.bf16.msra.mxu0 0
    %274 = vmatprep.subr.bf16.mxu0 0
    %275 = vmatpush2.bf16.msra.mxu0 0
    %276 = vmatprep.subr.bf16.mxu0 0
    %277 = vmatpush2.bf16.msra.mxu0 0
    %278 = vmatprep.subr.bf16.mxu0 0
    %279 = vmatpush2.bf16.msra.mxu0 0
    %280 = vmatprep.subr.bf16.mxu0 0
    %281 = vmatpush2.bf16.msra.mxu0 0
    %282 = vmatprep.subr.bf16.mxu0 0
    %283 = vmatpush2.bf16.msra.mxu0 0
    %284 = vmatprep.subr.bf16.mxu0 0
    %285 = vmatpush2.bf16.msra.mxu0 0
    %286 = vmatprep.subr.bf16.mxu0 0
    %287 = vmatpush2.bf16.msra.mxu0 0
    %288 = vmatprep.mubr.bf16.mxu0 0
    %289 = vmatmul.mubr.bf16.gmra.mxu0 %v254
    %v290 = vpop.f32.mrf.mxu0
    %v291 = vadd.f32 %v226, %v290
    %v292 = vpop.f32.mrf.mxu0
    %v293 = vpop.f32.mrf.mxu0
    %v294 = vpop.f32.mrf.mxu0
    %295 = vdwg.mxu0
    %v296 = vmax.f32 %v291, 0.0
    %v297 = vpack.c.bf16 %v296, %v296
    %v298 = vld [vmem:[%s7] sm:$0xf]
    %v299 = vld [vmem:[%s7 + $0x4] sm:$0xf]
    %v300 = vld [vmem:[%s7 + $0x8] sm:$0xf]
    %v301 = vld [vmem:[%s7 + $0xc] sm:$0xf]
    %v302 = vld [vmem:[%s8] sm:$0x1]
    %v304 = vlaneseq
    %v305 = vshrl.u32 %v304, 7
    %v306 = vsub.s32 0, %v305
    %v307 = vrot.slane %v302, %v306
    %v313 = vunpack.c.l.b16 %v298
    %v314 = vunpack.c.l.b16 %v299
    %v315 = vunpack.c.l.b16 %v300
    %v316 = vunpack.c.l.b16 %v301
    %v317 = vpack.c.b16 %v314, %v313
    %v318 = vpack.c.b16 %v316, %v315
    %vm321 = vcmask 261120
    %v323 = vsel %vm321, %v297, 0
    %325 = vmatprep.subr.bf16.mxu0 0
    %326 = vmatpush1.bf16.msra.mxu0 0
    %327 = vmatprep.subr.bf16.mxu0 0
    %328 = vmatpush1.bf16.msra.mxu0 0
    %329 = vmatprep.subr.bf16.mxu0 0
    %330 = vmatpush1.bf16.msra.mxu0 0
    %331 = vmatprep.subr.bf16.mxu0 0
    %332 = vmatpush1.bf16.msra.mxu0 0
    %333 = vmatprep.subr.bf16.mxu0 0
    %334 = vmatpush1.bf16.msra.mxu0 0
    %335 = vmatprep.subr.bf16.mxu0 0
    %336 = vmatpush1.bf16.msra.mxu0 0
    %337 = vmatprep.subr.bf16.mxu0 0
    %338 = vmatpush1.bf16.msra.mxu0 %v318
    %339 = vmatprep.subr.bf16.mxu0 0
    %340 = vmatpush1.bf16.msra.mxu0 %v317
    %341 = vmatprep.subr.bf16.mxu0 0
    %342 = vmatpush2.bf16.msra.mxu0 0
    %343 = vmatprep.subr.bf16.mxu0 0
    %344 = vmatpush2.bf16.msra.mxu0 0
    %345 = vmatprep.subr.bf16.mxu0 0
    %346 = vmatpush2.bf16.msra.mxu0 0
    %347 = vmatprep.subr.bf16.mxu0 0
    %348 = vmatpush2.bf16.msra.mxu0 0
    %349 = vmatprep.subr.bf16.mxu0 0
    %350 = vmatpush2.bf16.msra.mxu0 0
    %351 = vmatprep.subr.bf16.mxu0 0
    %352 = vmatpush2.bf16.msra.mxu0 0
    %353 = vmatprep.subr.bf16.mxu0 0
    %354 = vmatpush2.bf16.msra.mxu0 0
    %355 = vmatprep.subr.bf16.mxu0 0
    %356 = vmatpush2.bf16.msra.mxu0 0
    %357 = vmatprep.mubr.bf16.mxu0 0
    %358 = vmatmul.mubr.bf16.gmra.mxu0 %v323
    %v359 = vpop.f32.mrf.mxu0
    %v360 = vadd.f32 %v307, %v359
    %v361 = vpop.f32.mrf.mxu0
    %v362 = vpop.f32.mrf.mxu0
    %v363 = vpop.f32.mrf.mxu0
    %364 = vdwg.mxu0
    %v365 = vmax.f32 %v360, 0.0
    %v366 = vadd.f32 %v365, 1e-06
    %v367 = vlaneseq
    %v368 = vand.u32 %v367, 127
    %vm369 = vcmp.lt.s32.totalorder %v368, 8
    %vm370 = vcmp.ge.s32.totalorder %v368, 8
    %vm371 = vcmp.lt.s32.totalorder %v368, 16
    %vm372 = vmand %vm370, %vm371
    %v373 = vsel %vm369, %v366, 0.0
    %374 = vadd.xlane.f32.xlu0 %v373
    %v375 = vpop.xlane.xlu0 %374
    %v376 = vsel %vm372, %v366, 0.0
    %377 = vadd.xlane.f32.xlu0 %v376
    %v378 = vpop.xlane.xlu0 %377
    %v379 = vmax.f32 %v375, 1e-06
    %v380 = vrcp.pop %v379
    %v381 = vmax.f32 %v378, 1e-06
    %v382 = vrcp.pop %v381
    %v383 = vmul.f32 %v382, 3.3
    %v384 = vsel %vm372, %v383, 0.0
    %v385 = vsel %vm369, %v380, %v384
    %v386 = vmul.f32 %v366, %v385
    %387 = vst [vmem:[#allocation2] sm:$0xff] %v386
    // Predicated region
    $region38: #{tpu_custom_call.1} parent=1 // pred_check
      _
    $region39: #{tpu_custom_call.1} parent=1 // pred_check_branch
      %389 = sbr.rel (0) target = $region41
    $region40: #{tpu_custom_call.1} parent=1 // pred_region
      %s391 = ssub.s32 128, 128
      %392 = vsyncadd [#allocation3], %s391
      %s394 = sshll.u32 [#allocation2], 4
      %s395 = int_to_ptr.vmem [resolvable:$true] %s394
      %397 = dma.vmem_to_hbm [thread:$0]  %s395, 128, %s9, [#allocation3]
    $region41: #{tpu_custom_call.1} parent=1 // pred_fallthru
      _
    // Predicated region
    $region42: #{tpu_custom_call.1} parent=1 // pred_check
      _
    $region43: #{tpu_custom_call.1} parent=1 // pred_check_branch
      %399 = sbr.rel (0) target = $region45
    $region44: #{tpu_custom_call.1} parent=1 // pred_region
      %400 = dma.done [#allocation3], 128
    $region45: #{tpu_custom_call.1} parent=1 // pred_fallthru
      _
    %401 = vsyncpa [#allocation3], 1

</llo_original>
